<compile_context>
chip_gen: v5e
topology: v5e:2x2
jax: 0.10.0
libtpu: 0.0.40
codegen_flags: <defaults>
</compile_context>

<pallas_src>
import jax
import jax.numpy as jnp
from jax.experimental import pallas as pl
from jax.experimental.pallas import tpu as pltpu


# ---------------------------------------------------------------------------
# Kernels
# ---------------------------------------------------------------------------
def _conv1x1_mxu_kernel(w_ref, b_ref, x_ref, o_ref):
    # w_ref: (C_out, C_in) VMEM (x dtype), b_ref: (C_out, 1) f32 VMEM,
    # x_ref: (n_b, C_in, T) VMEM,          o_ref: (n_b, C_out, T) VMEM
    w = w_ref[...]
    bias = b_ref[...]
    for b in range(x_ref.shape[0]):
        acc = jnp.dot(w, x_ref[b], preferred_element_type=jnp.float32)
        o_ref[b] = (acc + bias).astype(o_ref.dtype)


def _conv1x1_vpu_kernel(w_ref, b_ref, x_ref, o_ref):
    # Tiny-channel path (UNet OutConv: C_in, C_out <= 8): skip the MXU and do
    # an outer-product accumulation on the VPU.  C_in full-(C_out, T) ops, one
    # f32 accumulator, each x row loaded/cast exactly once, no concatenates.
    # w_ref: (C_out, C_in) f32 VMEM, b_ref: (C_out, 1) f32 VMEM
    # x_ref: (n_b, C_in, T) VMEM,    o_ref: (n_b, C_out, T) VMEM
    n_b, c_in, _ = x_ref.shape
    w = w_ref[...].astype(jnp.float32)
    bias = b_ref[...]
    for b in range(n_b):
        xb = x_ref[b].astype(jnp.float32)            # (C_in, T), one load/cast
        acc = w[:, 0:1] * xb[0:1, :]                 # (C_out, 1)*(1, T) -> (C_out, T)
        for c in range(1, c_in):
            acc = acc + w[:, c:c + 1] * xb[c:c + 1, :]
        o_ref[b] = (acc + bias).astype(o_ref.dtype)


# ---------------------------------------------------------------------------
# Tiling helpers
# ---------------------------------------------------------------------------
def _round_up(x, m):
    return ((x + m - 1) // m) * m


def _sublane_pad(c, itemsize):
    # VMEM second-minor dim pads to the native sublane tile (8 for f32,
    # 16 for bf16, 32 for int8/fp8).
    pack = max(1, 4 // max(itemsize, 1))
    return _round_up(max(c, 1), 8 * pack)


def _vmem_budget_and_phys():
    """Generation-aware (budget, physical) VMEM bytes."""
    phys = None
    try:
        info = pltpu.get_tpu_info()
        for attr in ("vmem_capacity_bytes", "vmem_size_bytes", "vmem_bytes"):
            v = getattr(info, attr, None)
            if isinstance(v, int) and v > 0:
                phys = int(v)
                break
    except Exception:
        phys = None
    if phys is None:
        try:
            kind = jax.devices()[0].device_kind.lower()
        except Exception:
            kind = ""
        if "v7" in kind:
            phys = 64 * 1024 * 1024
        elif ("v5" in kind) or ("v6" in kind):
            phys = 128 * 1024 * 1024
        else:
            phys = 64 * 1024 * 1024          # conservative default
    # ~half of physical: 64 MiB on v5e/v6e, 32 MiB on v7x.
    budget = min(max(phys // 2, 24 * 1024 * 1024), 96 * 1024 * 1024)
    return budget, phys


def _choose_tiling(N, C_in, C_out, HW, x_item, o_item, budget, resident_bytes):
    """Pick (images per step n_b, lane tile t_hw) to maximise streamed bytes
    per grid step within the double-buffered VMEM budget, while keeping the
    grid >= 2 steps (megacore) whenever the problem allows it."""
    col_bytes = (_sublane_pad(C_in, x_item) * x_item
                 + _sublane_pad(C_out, o_item) * o_item)
    avail = max(budget - 2 * resident_bytes, 1 << 20)
    max_lanes = max(avail // (2 * col_bytes), 256)   # in + out, double-buffered

    if HW >= 512:
        # Large spatial extent: one image per step, tile spatially.
        n_b = 1
        if HW <= max_lanes:
            t_hw = HW                                  # full-dim block
            if N == 1:
                # Split so both v7x TensorCores get work (>= 2 grid steps).
                t_hw = min(_round_up(-(-HW // 2), 256), HW)
        else:
            t_hw = max(256, (int(max_lanes) // 256) * 256)
    else:
        # Small spatial extent (e.g. 7x7 / 16x16 heads): pack several batch
        # images per grid step so the per-step DMA stays reasonably large.
        t_hw = HW
        n_b = max(1, min(N, int(max_lanes) // max(HW, 1)))
        if N >= 2:
            n_b = min(n_b, (N + 1) // 2)               # keep >= 2 grid steps
    return n_b, t_hw


# ---------------------------------------------------------------------------
# Wrapper
# ---------------------------------------------------------------------------
def out_conv(x_nchw, weight, bias=None, *, out_dtype=None, vmem_budget_bytes=None):
    """1x1 Conv2d (PyTorch OutConv forward).

    x_nchw: (N, C_in, H, W)     -- streamed in its native dtype (no wrapper cast)
    weight: (C_out, C_in, 1, 1) -- PyTorch conv weight layout
    bias:   (C_out,) or None
    returns (N, C_out, H, W), dtype of x unless out_dtype is given.
    """
    N, C_in, H, W = x_nchw.shape
    C_out = weight.shape[0]
    HW = H * W
    if out_dtype is None:
        out_dtype = x_nchw.dtype
    if bias is None:
        bias = jnp.zeros((C_out,), jnp.float32)

    # Free reshape only: stays NCHW, spatial flattened onto lanes.
    x3d = x_nchw.reshape(N, C_in, HW)
    x_item = jnp.dtype(x3d.dtype).itemsize
    o_item = jnp.dtype(out_dtype).itemsize

    # Path selection: tiny channel counts -> VPU outer product; else MXU.
    use_vpu = (C_in <= 8) and (C_out <= 8) and (C_in * C_out <= 64)

    # Only the tiny weight/bias tensors are cast in the wrapper.
    if use_vpu:
        w2d = weight.reshape(C_out, C_in).astype(jnp.float32)
    else:
        w2d = weight.reshape(C_out, C_in).astype(x3d.dtype)
    b2d = bias.astype(jnp.float32).reshape(C_out, 1)
    w_item = jnp.dtype(w2d.dtype).itemsize

    # Grid-resident weight/bias VMEM footprint (padded to (sublane,128) tiles).
    resident_bytes = (_sublane_pad(C_out, w_item) * _round_up(C_in, 128) * w_item
                      + _sublane_pad(C_out, 4) * 128 * 4)

    budget, phys = _vmem_budget_and_phys()
    if vmem_budget_bytes is not None:
        budget = min(int(vmem_budget_bytes), phys * 3 // 4)

    n_b, t_hw = _choose_tiling(N, C_in, C_out, HW, x_item, o_item, budget,
                               resident_bytes)

    # Derive the compiler VMEM limit from the actual working set (never a
    # hard-coded constant that could conflict with the budget).
    col_bytes = (_sublane_pad(C_in, x_item) * x_item
                 + _sublane_pad(C_out, o_item) * o_item)
    working_set = 2 * n_b * _round_up(t_hw, 128) * col_bytes + 2 * resident_bytes
    vmem_limit = int(min(max(int(working_set * 1.25) + (4 << 20), 32 << 20),
                         phys * 3 // 4))

    grid = (pl.cdiv(N, n_b), pl.cdiv(HW, t_hw))
    kernel = _conv1x1_vpu_kernel if use_vpu else _conv1x1_mxu_kernel

    cost = pl.CostEstimate(
        flops=2 * N * C_out * C_in * HW,
        transcendentals=0,
        bytes_accessed=(N * C_in * HW * x_item + N * C_out * HW * o_item
                        + C_out * C_in * w_item + C_out * 4),
    )

    # NOTE: pipeline_mode=pl.Buffered(3) on the x/o specs is a possible
    # single-digit-% follow-up on v7x; omitted to keep the default 2-deep
    # pipeline (already sufficient once the tiles are large).
    y3d = pl.pallas_call(
        kernel,
        out_shape=jax.ShapeDtypeStruct((N, C_out, HW), out_dtype),
        grid_spec=pltpu.PrefetchScalarGridSpec(
            num_scalar_prefetch=0,
            grid=grid,
            in_specs=[
                pl.BlockSpec((C_out, C_in), lambda n, j: (0, 0)),   # resident W
                pl.BlockSpec((C_out, 1), lambda n, j: (0, 0)),      # resident bias
                pl.BlockSpec((n_b, C_in, t_hw), lambda n, j: (n, 0, j)),
            ],
            out_specs=pl.BlockSpec((n_b, C_out, t_hw), lambda n, j: (n, 0, j)),
        ),
        compiler_params=pltpu.CompilerParams(
            dimension_semantics=("parallel", "parallel"),
            vmem_limit_bytes=vmem_limit,
        ),
        cost_estimate=cost,
    )(w2d, b2d, x3d)

    return y3d.reshape(N, C_out, H, W)


# ---------------------------------------------------------------------------
# Self-test
# ---------------------------------------------------------------------------
if __name__ == "__main__":
    key = jax.random.PRNGKey(0)
    keys = jax.random.split(key, 9)

    def ref_conv(x, w, b):
        co, ci = w.shape[0], w.shape[1]
        return (jnp.einsum("nchw,oc->nohw", x.astype(jnp.float32),
                           w.reshape(co, ci).astype(jnp.float32),
                           precision=jax.lax.Precision.HIGHEST)
                + b.reshape(1, co, 1, 1).astype(jnp.float32))

    # ---- UNet OutConv case: tiny channels (VPU outer-product path) ----
    N, C_in, C_out, H, W = 2, 4, 3, 16, 16
    x = jax.random.normal(keys[0], (N, C_in, H, W), dtype=jnp.float32)
    w = jax.random.normal(keys[1], (C_out, C_in, 1, 1), dtype=jnp.float32) * 0.1
    b = jax.random.normal(keys[2], (C_out,), dtype=jnp.float32) * 0.1
    y = jax.block_until_ready(out_conv(x, w, b))
    assert y.shape == (N, C_out, H, W)
    assert jnp.allclose(y, ref_conv(x, w, b), atol=1e-5, rtol=1e-5)

    # ---- Small-spatial heads: several images per grid step (batched blocks) ----
    N2, C_in2, C_out2, H2, W2 = 4, 3, 2, 8, 8
    x2 = jax.random.normal(keys[3], (N2, C_in2, H2, W2), dtype=jnp.float32)
    w2 = jax.random.normal(keys[4], (C_out2, C_in2, 1, 1), dtype=jnp.float32) * 0.1
    b2 = jax.random.normal(keys[5], (C_out2,), dtype=jnp.float32) * 0.1
    y2 = jax.block_until_ready(out_conv(x2, w2, b2))
    assert y2.shape == (N2, C_out2, H2, W2)
    assert jnp.allclose(y2, ref_conv(x2, w2, b2), atol=1e-5, rtol=1e-5)

    # ---- Larger channels (MXU path), N == 1 -> spatial split for 2 TCs ----
    N3, C_in3, C_out3, H3, W3 = 1, 64, 32, 64, 64
    x3 = jax.random.normal(keys[6], (N3, C_in3, H3, W3), dtype=jnp.float32)
    w3 = jax.random.normal(keys[7], (C_out3, C_in3, 1, 1), dtype=jnp.float32) * 0.05
    b3 = jax.random.normal(keys[8], (C_out3,), dtype=jnp.float32) * 0.05
    y3 = jax.block_until_ready(out_conv(x3, w3, b3))
    assert y3.shape == (N3, C_out3, H3, W3)
    assert jnp.allclose(y3, ref_conv(x3, w3, b3), atol=2e-2, rtol=2e-2)

    # ---- bf16 activations from a producer: streamed as-is (no wrapper cast) ----
    y4 = jax.block_until_ready(out_conv(x3.astype(jnp.bfloat16), w3, b3))
    assert y4.dtype == jnp.bfloat16
    assert jnp.allclose(y4.astype(jnp.float32), ref_conv(x3, w3, b3),
                        atol=5e-2, rtol=5e-2)

    print("KERNEL_OK")
</pallas_src>

<mosaic_0001>
module attributes {stable_mosaic.version = 11 : i64} {
  func.func @_conv1x1_vpu_kernel(%arg0: i32, %arg1: i32, %arg2: memref<3x4xf32, #tpu.memory_space<vmem>>, %arg3: memref<3x1xf32, #tpu.memory_space<vmem>>, %arg4: memref<1x4x256xf32, #tpu.memory_space<vmem>>, %arg5: memref<1x3x256xf32, #tpu.memory_space<vmem>>) attributes {dimension_semantics = [#tpu.dimension_semantics<parallel>, #tpu.dimension_semantics<parallel>], iteration_bounds = array<i64: 2, 1>, scalar_prefetch = 0 : i64, scratch_operands = 0 : i64, tpu.core_type = #tpu.core_type<tc>, window_params = [{pipeline_mode = #tpu.pipeline_mode<synchronous>, transform_indices = @transform_0, window_bounds = array<i64: 3, 4>}, {pipeline_mode = #tpu.pipeline_mode<synchronous>, transform_indices = @transform_1, window_bounds = array<i64: 3, 1>}, {transform_indices = @transform_2, window_bounds = array<i64: 1, 4, 256>}, {transform_indices = @transform_3, window_bounds = array<i64: 1, 3, 256>}]} {
    %c0 = arith.constant 0 : index
    %c0_0 = arith.constant 0 : index
    %0 = vector.load %arg2[%c0, %c0_0] : memref<3x4xf32, #tpu.memory_space<vmem>>, vector<3x4xf32>
    %c0_1 = arith.constant 0 : index
    %c0_2 = arith.constant 0 : index
    %1 = vector.load %arg3[%c0_1, %c0_2] : memref<3x1xf32, #tpu.memory_space<vmem>>, vector<3x1xf32>
    %c0_3 = arith.constant 0 : index
    %c0_4 = arith.constant 0 : index
    %c0_5 = arith.constant 0 : index
    %2 = vector.load %arg4[%c0_3, %c0_4, %c0_5] : memref<1x4x256xf32, #tpu.memory_space<vmem>>, vector<1x4x256xf32>
    %3 = vector.shape_cast %2 : vector<1x4x256xf32> to vector<4x256xf32>
    %4 = vector.extract_strided_slice %0 {offsets = [0, 0], sizes = [3, 1], strides = [1, 1]} : vector<3x4xf32> to vector<3x1xf32>
    %5 = vector.extract_strided_slice %3 {offsets = [0, 0], sizes = [1, 256], strides = [1, 1]} : vector<4x256xf32> to vector<1x256xf32>
    %6 = vector.broadcast %4 : vector<3x1xf32> to vector<3x256xf32>
    %7 = vector.broadcast %5 : vector<1x256xf32> to vector<3x256xf32>
    %8 = arith.mulf %6, %7 : vector<3x256xf32>
    %9 = vector.extract_strided_slice %0 {offsets = [0, 1], sizes = [3, 1], strides = [1, 1]} : vector<3x4xf32> to vector<3x1xf32>
    %10 = vector.extract_strided_slice %3 {offsets = [1, 0], sizes = [1, 256], strides = [1, 1]} : vector<4x256xf32> to vector<1x256xf32>
    %11 = vector.broadcast %9 : vector<3x1xf32> to vector<3x256xf32>
    %12 = vector.broadcast %10 : vector<1x256xf32> to vector<3x256xf32>
    %13 = arith.mulf %11, %12 : vector<3x256xf32>
    %14 = arith.addf %8, %13 : vector<3x256xf32>
    %15 = vector.extract_strided_slice %0 {offsets = [0, 2], sizes = [3, 1], strides = [1, 1]} : vector<3x4xf32> to vector<3x1xf32>
    %16 = vector.extract_strided_slice %3 {offsets = [2, 0], sizes = [1, 256], strides = [1, 1]} : vector<4x256xf32> to vector<1x256xf32>
    %17 = vector.broadcast %15 : vector<3x1xf32> to vector<3x256xf32>
    %18 = vector.broadcast %16 : vector<1x256xf32> to vector<3x256xf32>
    %19 = arith.mulf %17, %18 : vector<3x256xf32>
    %20 = arith.addf %14, %19 : vector<3x256xf32>
    %21 = vector.extract_strided_slice %0 {offsets = [0, 3], sizes = [3, 1], strides = [1, 1]} : vector<3x4xf32> to vector<3x1xf32>
    %22 = vector.extract_strided_slice %3 {offsets = [3, 0], sizes = [1, 256], strides = [1, 1]} : vector<4x256xf32> to vector<1x256xf32>
    %23 = vector.broadcast %21 : vector<3x1xf32> to vector<3x256xf32>
    %24 = vector.broadcast %22 : vector<1x256xf32> to vector<3x256xf32>
    %25 = arith.mulf %23, %24 : vector<3x256xf32>
    %26 = arith.addf %20, %25 : vector<3x256xf32>
    %27 = vector.broadcast %1 : vector<3x1xf32> to vector<3x256xf32>
    %28 = arith.addf %26, %27 : vector<3x256xf32>
    %c0_6 = arith.constant 0 : index
    %c0_7 = arith.constant 0 : index
    %c0_8 = arith.constant 0 : index
    %29 = vector.load %arg5[%c0_6, %c0_7, %c0_8] : memref<1x3x256xf32, #tpu.memory_space<vmem>>, vector<1x3x256xf32>
    %30 = vector.shape_cast %29 : vector<1x3x256xf32> to vector<3x256xf32>
    %31 = vector.shape_cast %28 : vector<3x256xf32> to vector<1x3x256xf32>
    tpu.vector_store %arg5[%c0_6, %c0_7, %c0_8], %31 {strides = array<i32>} : memref<1x3x256xf32, #tpu.memory_space<vmem>>, vector<1x3x256xf32>,
    return
  }
  func.func @transform_0(%arg0: i32, %arg1: i32) -> (i32, i32) {
    %c0_i32 = arith.constant 0 : i32
    %c0_i32_0 = arith.constant 0 : i32
    %c0_i32_1 = arith.constant 0 : i32
    return %c0_i32, %c0_i32_0 : i32, i32
  }
  func.func @transform_1(%arg0: i32, %arg1: i32) -> (i32, i32) {
    %c0_i32 = arith.constant 0 : i32
    %c0_i32_0 = arith.constant 0 : i32
    %c0_i32_1 = arith.constant 0 : i32
    return %c0_i32, %c0_i32_0 : i32, i32
  }
  func.func @transform_2(%arg0: i32, %arg1: i32) -> (i32, i32, i32) {
    %c0_i32 = arith.constant 0 : i32
    %c0_i32_0 = arith.constant 0 : i32
    return %arg0, %c0_i32, %arg1 : i32, i32, i32
  }
  func.func @transform_3(%arg0: i32, %arg1: i32) -> (i32, i32, i32) {
    %c0_i32 = arith.constant 0 : i32
    %c0_i32_0 = arith.constant 0 : i32
    return %arg0, %c0_i32, %arg1 : i32, i32, i32
  }
}

</mosaic_0001>

<llo_original>
// kernel: tpu_custom_call.1
$region0: #{tpu_custom_call.1}
  #allocation0 [shape = 'u32[]', space=smem, size = 0x4, offset = 0x4, fixed_abs, tag = 'smem constant byte address 0x4 - core index']
  #allocation1 [shape = 'u32[72,128]{1,0:T(1,128)}', space=vmem, size = 0x9000, scoped, tag = 'internal scratch']
  %s0 = inlined_call_operand.vmem [shape: f32[3,4], index: 0, kind: input, shape index: {}]
  %s1 = inlined_call_operand.vmem [shape: f32[3,1], index: 1, kind: input, shape index: {}]
  %s2 = inlined_call_operand.hbm [shape: f32[2,4,256], index: 2, kind: input, shape index: {}]
  %s3 = inlined_call_operand.vmem [shape: f32[2,3,256], index: 3, kind: output, shape index: {}]
  %s4 = sld [smem:[#allocation0]]
  $region49: #{tpu_custom_call.1} parent=0
    _
  %s6 = ssub.s32 1, %s4
  %s7 = scalar_select 0, %s6, %s4
  $region1: #{tpu_custom_call.1} parent=0
    #allocation2 [shape = 'u8[8192]{0}', space=vmem, size = 0x2000, scoped, tag = 'input window, operand 2']
    #allocation3 [shape = 's32[2]{0}', space=sflag, size = 0x8, scoped, tag = 'scoped memory for tpu_custom_call.1']
    %8 = vsyncpa [#allocation3], 0
    %s9 = scalar_lea.sflag [#allocation3], 1
    %10 = vsyncpa %s9, 0
    loop: start=0, step=1, limit=4
    $region2: #{tpu_custom_call.1} parent=1 // loop_pre_header
      _
    $region3: #{tpu_custom_call.1} parent=1 // loop_header
      %s12 = sphi 0, %s16
      %p13 = scmp.ge.s32.totalorder %s12, 4
      %s19 = sphi 0, %s31
      %s20 = sphi 0, %s27
      %s21 = sphi 0, %s19
      %s22 = sphi 0, %s20
      %s23 = sphi 0, %s21
      %s24 = sphi 0, %s22
      %s32 = sphi 0, %s32
      %s34 = sphi 0, %s32
      %s35 = sphi 0, %s34
      %s49 = sphi 0, %s35
      %s53 = sphi 0, %s53
      %s55 = sphi 0, %s53
      %s56 = sphi 0, %s55
      %s70 = sphi 0, %s56
      %s78 = sphi 0, %s80
      %s81 = sphi 0, %s78
      %s82 = sphi 0, %s81
      %s98 = sphi 0, %s82
      %s106 = sphi 0, %s108
      %s109 = sphi 0, %s106
      %s110 = sphi 0, %s109
      %s126 = sphi 0, %s110
    $region4: #{tpu_custom_call.1} parent=1 // loop_header_branch
      %15 = sbr.rel (%p13) target = $region8
    $region5: #{tpu_custom_call.1} parent=1 // loop_body
      %s17 = ssub.s32 %s12, 1
      %s18 = ssub.s32 %s12, 2
      %s25 = sadd.s32 1, %s20
      %p26 = scmp.ge.s32.totalorder %s25, 1
      %s27 = scalar_select %p26, 0, %s25
      %s28 = sadd.s32 1, %s19
      %s29 = scalar_select %p26, %s28, %s19
      %p30 = scmp.ge.s32.totalorder %s29, 2
      %s31 = scalar_select %p30, 0, %s29
      %s33 = sadd.s32 %s32, 1
      %p36 = scmp.eq.s32.totalorder %s12, 1
      %p37 = scmp.ne.s32.totalorder %s32, %s34
      %p38 = scmp.eq.s32.totalorder %s12, 0
      %p39 = por %p37, %p38
      %p40 = scmp.ne.s32.totalorder %s32, %s34
      %p41 = scmp.eq.s32.totalorder %s17, 1
      %p42 = por %p40, %p41
      %p43 = scmp.ne.s32.totalorder %s34, %s35
      %p44 = scmp.eq.s32.totalorder %s17, 0
      %p45 = por %p43, %p44
      %p46 = scmp.ne.s32.totalorder %s34, %s35
      %p47 = scmp.eq.s32.totalorder %s18, 1
      %p48 = por %p46, %p47
      %p50 = scmp.ne.s32.totalorder %s35, %s49
      %p51 = scmp.eq.s32.totalorder %s18, 0
      %p52 = por %p50, %p51
      %s54 = sadd.s32 %s53, 1
      %p57 = scmp.eq.s32.totalorder %s12, 1
      %p58 = scmp.ne.s32.totalorder %s53, %s55
      %p59 = scmp.eq.s32.totalorder %s12, 0
      %p60 = por %p58, %p59
      %p61 = scmp.ne.s32.totalorder %s53, %s55
      %p62 = scmp.eq.s32.totalorder %s17, 1
      %p63 = por %p61, %p62
      %p64 = scmp.ne.s32.totalorder %s55, %s56
      %p65 = scmp.eq.s32.totalorder %s17, 0
      %p66 = por %p64, %p65
      %p67 = scmp.ne.s32.totalorder %s55, %s56
      %p68 = scmp.eq.s32.totalorder %s18, 1
      %p69 = por %p67, %p68
      %p71 = scmp.ne.s32.totalorder %s56, %s70
      %p72 = scmp.eq.s32.totalorder %s18, 0
      %p73 = por %p71, %p72
      %s74 = ssub.s32 %s19, %s31
      %s75 = ssub.s32 %s20, %s27
      %s76 = sor.u32 %s74, %s75
      %p77 = scmp.eq.s32.totalorder %s76, 0
      %s79 = sadd.s32 %s78, 1
      %s80 = scalar_select %p77, %s78, %s79
      %p83 = pneg %p77
      %p84 = scmp.eq.s32.totalorder %s12, 1
      %p85 = por %p83, %p84
      %p86 = scmp.ne.s32.totalorder %s78, %s81
      %p87 = scmp.eq.s32.totalorder %s12, 0
      %p88 = por %p86, %p87
      %p89 = scmp.ne.s32.totalorder %s78, %s81
      %p90 = scmp.eq.s32.totalorder %s17, 1
      %p91 = por %p89, %p90
      %p92 = scmp.ne.s32.totalorder %s81, %s82
      %p93 = scmp.eq.s32.totalorder %s17, 0
      %p94 = por %p92, %p93
      %p95 = scmp.ne.s32.totalorder %s81, %s82
      %p96 = scmp.eq.s32.totalorder %s18, 1
      %p97 = por %p95, %p96
      %p99 = scmp.ne.s32.totalorder %s82, %s98
      %p100 = scmp.eq.s32.totalorder %s18, 0
      %p101 = por %p99, %p100
      %s102 = ssub.s32 %s19, %s31
      %s103 = ssub.s32 %s20, %s27
      %s104 = sor.u32 %s102, %s103
      %p105 = scmp.eq.s32.totalorder %s104, 0
      %s107 = sadd.s32 %s106, 1
      %s108 = scalar_select %p105, %s106, %s107
      %p111 = pneg %p105
      %p112 = scmp.eq.s32.totalorder %s12, 1
      %p113 = por %p111, %p112
      %p114 = scmp.ne.s32.totalorder %s106, %s109
      %p115 = scmp.eq.s32.totalorder %s12, 0
      %p116 = por %p114, %p115
      %p117 = scmp.ne.s32.totalorder %s106, %s109
      %p118 = scmp.eq.s32.totalorder %s17, 1
      %p119 = por %p117, %p118
      %p120 = scmp.ne.s32.totalorder %s109, %s110
      %p121 = scmp.eq.s32.totalorder %s17, 0
      %p122 = por %p120, %p121
      %p123 = scmp.ne.s32.totalorder %s109, %s110
      %p124 = scmp.eq.s32.totalorder %s18, 1
      %p125 = por %p123, %p124
      %p127 = scmp.ne.s32.totalorder %s110, %s126
      %p128 = scmp.eq.s32.totalorder %s18, 0
      %p129 = por %p127, %p128
      %p130 = scmp.le.s32.totalorder 1, %s12
      %p131 = scmp.lt.s32.totalorder %s12, 3
      %p132 = pnand %p130, %p131
      %p133 = pneg %p132
      // Predicated region
      $region9: #{tpu_custom_call.1} parent=5 // pred_check
        _
      $region10: #{tpu_custom_call.1} parent=5 // pred_check_branch
        %135 = sbr.rel (%p132) target = $region12
      $region11: #{tpu_custom_call.1} parent=5 // pred_region
        %s136 = ssub.s32 %s12, 1
        // Predicated region
        $region13: #{tpu_custom_call.1} parent=11 // pred_check
          %p137 = pneg %p45
        $region14: #{tpu_custom_call.1} parent=11 // pred_check_branch
          %139 = sbr.rel (%p137) target = $region16
        $region15: #{tpu_custom_call.1} parent=11 // pred_region
          _
        $region16: #{tpu_custom_call.1} parent=11 // pred_fallthru
          _
        // Predicated region
        $region17: #{tpu_custom_call.1} parent=11 // pred_check
          %p140 = pneg %p66
        $region18: #{tpu_custom_call.1} parent=11 // pred_check_branch
          %142 = sbr.rel (%p140) target = $region20
        $region19: #{tpu_custom_call.1} parent=11 // pred_region
          _
        $region20: #{tpu_custom_call.1} parent=11 // pred_fallthru
          _
      $region12: #{tpu_custom_call.1} parent=5 // pred_fallthru
        _
      %p143 = scmp.lt.s32.totalorder %s12, 2
      // Predicated region
      $region21: #{tpu_custom_call.1} parent=5 // pred_check
        %p144 = pneg %p143
      $region22: #{tpu_custom_call.1} parent=5 // pred_check_branch
        %146 = sbr.rel (%p144) target = $region24
      $region23: #{tpu_custom_call.1} parent=5 // pred_region
        // Predicated region
        $region25: #{tpu_custom_call.1} parent=23 // pred_check
          %p147 = pneg %p88
        $region26: #{tpu_custom_call.1} parent=23 // pred_check_branch
          %149 = sbr.rel (%p147) target = $region28
        $region27: #{tpu_custom_call.1} parent=23 // pred_region
          %s150 = sand.u32 %s78, 1
          %s151 = scalar_lea.sflag [#allocation3], %s150
          %s152 = sand.u32 %s78, 1
          %s153 = smul.addr %s152, 8
          %s154 = scalar_lea.vmem [#allocation2], %s153
          %s155 = smul.u32 2, %s20
          %157 = vsyncadd %s151, 0
          %s158 = smul.addr %s19, 2
          %s159 = sadd.s32 %s155, %s158
          %s160 = smul.addr %s159, 4
          %s161 = scalar_lea.hbm %s2, %s160
          %s163 = sshll.u32 %s161, 4
          %s164 = int_to_ptr.hbm [resolvable:$true] %s163
          %s165 = sshll.u32 %s154, 4
          %s166 = int_to_ptr.vmem [resolvable:$true] %s165
          %168 = dma.hbm_to_vmem [thread:$0]  %s164, 128, %s166, %s151
        $region28: #{tpu_custom_call.1} parent=23 // pred_fallthru
          _
      $region24: #{tpu_custom_call.1} parent=5 // pred_fallthru
        _
      %p169 = scmp.le.s32.totalorder 1, %s12
      %p170 = scmp.lt.s32.totalorder %s12, 3
      %p171 = pnand %p169, %p170
      %p172 = pneg %p171
      // Predicated region
      $region29: #{tpu_custom_call.1} parent=5 // pred_check
        _
      $region30: #{tpu_custom_call.1} parent=5 // pred_check_branch
        %174 = sbr.rel (%p171) target = $region32
      $region31: #{tpu_custom_call.1} parent=5 // pred_region
        %s175 = ssub.s32 %s12, 1
        %s176 = sand.u32 %s81, 1
        %s177 = scalar_lea.sflag [#allocation3], %s176
        %s178 = sand.u32 %s81, 1
        %s179 = smul.addr %s178, 8
        %s180 = scalar_lea.vmem [#allocation2], %s179
        // Predicated region
        $region33: #{tpu_custom_call.1} parent=31 // pred_check
          %p181 = pneg %p94
        $region34: #{tpu_custom_call.1} parent=31 // pred_check_branch
          %183 = sbr.rel (%p181) target = $region36
        $region35: #{tpu_custom_call.1} parent=31 // pred_region
          %185 = dma.done %s177, 128
        $region36: #{tpu_custom_call.1} parent=31 // pred_fallthru
          _
        %p186 = pneg %p45
        %p187 = pneg %p42
        %p188 = pneg %p66
        %p189 = pneg %p63
        %s190 = sand.u32 %s81, 1
        %s191 = scalar_lea.sflag [#allocation3], %s190
        %s192 = sand.u32 %s81, 1
        %s193 = smul.addr %s192, 8
        %s194 = scalar_lea.vmem [#allocation2], %s193
        %p195 = pneg %p94
        %p196 = pneg %p91
        %p197 = pneg %p122
        %p198 = pneg %p119
        %s199 = smul.u32 2, %s22
        %p200 = scmp.lt.s32.totalorder %s21, 1
        %s201 = scalar_select %p200, %s21, 1
        %p202 = scmp.lt.s32.totalorder %s199, 1
        %s203 = scalar_select %p202, %s199, 1
        %s204 = smul.addr %s201, 2
        %s205 = sadd.s32 %s203, %s204
        %s206 = smul.addr %s205, 4
        %s207 = scalar_lea.vmem %s3, %s206
        %s208 = smul.u32 2, %s22
        %s209 = smul.u32 2, %s22
        %p210 = scmp.lt.s32.totalorder %s21, 1
        %s211 = scalar_select %p210, %s21, 1
        %p212 = scmp.lt.s32.totalorder %s209, 1
        %s213 = scalar_select %p212, %s209, 1
        %s214 = smul.addr %s211, 2
        %s215 = sadd.s32 %s213, %s214
        %s216 = smul.addr %s215, 4
        %s217 = scalar_lea.vmem %s3, %s216
        %s218 = smul.u32 2, %s22
        %v219 = vld [vmem:[%s0] sm:$0x7]
        %v220 = vld [vmem:[%s1] sm:$0x7]
        %v221 = vld [vmem:[%s180] sm:$0xff]
        %223 = vset.pattern.permute.xlu0 0
        %224 = vperm.xlu0 %223, %v219
        %v225 = vpop.permute.xlu0 %224
        %v228 = vperm.slane %v221, 0
        %v229 = vperm.slane %v221, 4
        %v232 = vperm.slane %v228, 0
        %v233 = vperm.slane %v229, 0
        %v234 = vmul.f32 %v225, %v232
        %v235 = vmul.f32 %v225, %v233
        %236 = vset.pattern.permute.xlu0 1
        %237 = vperm.xlu0 %236, %v219
        %v238 = vpop.permute.xlu0 %237
        %v240 = vperm.slane %v221, 1
        %v241 = vperm.slane %v221, 5
        %v244 = vperm.slane %v240, 1
        %v245 = vperm.slane %v241, 1
        %v246 = vmul.f32 %v238, %v244
        %v247 = vmul.f32 %v238, %v245
        %v248 = vadd.f32 %v234, %v246
        %v249 = vadd.f32 %v235, %v247
        %250 = vset.pattern.permute.xlu0 2
        %251 = vperm.xlu0 %250, %v219
        %v252 = vpop.permute.xlu0 %251
        %v254 = vperm.slane %v221, 2
        %v255 = vperm.slane %v221, 6
        %v258 = vperm.slane %v254, 2
        %v259 = vperm.slane %v255, 2
        %v260 = vmul.f32 %v252, %v258
        %v261 = vmul.f32 %v252, %v259
        %v262 = vadd.f32 %v248, %v260
        %v263 = vadd.f32 %v249, %v261
        %264 = vset.pattern.permute.xlu0 3
        %265 = vperm.xlu0 %264, %v219
        %v266 = vpop.permute.xlu0 %265
        %v268 = vperm.slane %v221, 3
        %v269 = vperm.slane %v221, 7
        %v272 = vperm.slane %v268, 3
        %v273 = vperm.slane %v269, 3
        %v274 = vmul.f32 %v266, %v272
        %v275 = vmul.f32 %v266, %v273
        %v276 = vadd.f32 %v262, %v274
        %v277 = vadd.f32 %v263, %v275
        %279 = vset.pattern.permute.xlu0 0
        %280 = vperm.xlu0 %279, %v220
        %v281 = vpop.permute.xlu0 %280
        %v283 = vadd.f32 %v276, %v281
        %v284 = vadd.f32 %v277, %v281
        %v287 = vrot.slane %v284, 4
        %vm288 = vcmask 1043456
        %v289 = vsel %vm288, %v283, %v287
        %291 = vst [vmem:[%s217] sm:$0x77] %v289
        %s292 = smul.u32 2, %s22
        %p293 = scmp.lt.s32.totalorder %s21, 1
        %s294 = scalar_select %p293, %s21, 1
        %p295 = scmp.lt.s32.totalorder %s292, 1
        %s296 = scalar_select %p295, %s292, 1
        %s297 = smul.addr %s294, 2
        %s298 = sadd.s32 %s296, %s297
        %s299 = smul.addr %s298, 4
        %s300 = scalar_lea.vmem %s3, %s299
        // Predicated region
        $region37: #{tpu_custom_call.1} parent=31 // pred_check
          %p301 = pneg %p119
        $region38: #{tpu_custom_call.1} parent=31 // pred_check_branch
          %303 = sbr.rel (%p301) target = $region40
        $region39: #{tpu_custom_call.1} parent=31 // pred_region
          %s304 = smul.u32 2, %s22
        $region40: #{tpu_custom_call.1} parent=31 // pred_fallthru
          _
      $region32: #{tpu_custom_call.1} parent=5 // pred_fallthru
        _
      %p305 = scmp.le.s32.totalorder 2, %s12
      // Predicated region
      $region41: #{tpu_custom_call.1} parent=5 // pred_check
        %p306 = pneg %p305
      $region42: #{tpu_custom_call.1} parent=5 // pred_check_branch
        %308 = sbr.rel (%p306) target = $region44
      $region43: #{tpu_custom_call.1} parent=5 // pred_region
        %s309 = ssub.s32 %s12, 2
        // Predicated region
        $region45: #{tpu_custom_call.1} parent=43 // pred_check
          %p310 = pneg %p125
        $region46: #{tpu_custom_call.1} parent=43 // pred_check_branch
          %312 = sbr.rel (%p310) target = $region48
        $region47: #{tpu_custom_call.1} parent=43 // pred_region
          %s313 = smul.u32 2, %s24
          %p314 = scmp.lt.s32.totalorder %s23, 1
          %s315 = scalar_select %p314, %s23, 1
          %p316 = scmp.lt.s32.totalorder %s313, 1
          %s317 = scalar_select %p316, %s313, 1
          %s318 = smul.addr %s315, 2
          %s319 = sadd.s32 %s317, %s318
          %s320 = smul.addr %s319, 4
          %s321 = scalar_lea.vmem %s3, %s320
        $region48: #{tpu_custom_call.1} parent=43 // pred_fallthru
          _
      $region44: #{tpu_custom_call.1} parent=5 // pred_fallthru
        _
    $region6: #{tpu_custom_call.1} parent=1 // loop_footer
      %s16 = sadd.s32 1, %s12
    $region7: #{tpu_custom_call.1} parent=1 // loop_footer_branch
      %11 = sbr.rel target = $region3
    $region8: #{tpu_custom_call.1} parent=1 // loop_exit
      _
    %322 = vsyncpa [#allocation3], 1
    %s323 = scalar_lea.sflag [#allocation3], 1
    %324 = vsyncpa %s323, 1

</llo_original>
